<compile_context>
chip_gen: v7x
topology: tpu7x:2x2x1
jax: 0.10.0
libtpu: 0.0.40
codegen_flags: <defaults>
</compile_context>

<pallas_src>
import functools
import math

import jax
import jax.numpy as jnp
from jax.experimental import pallas as pl
from jax.experimental.pallas import tpu as pltpu

LANE = 128  # lane width / feature padding


def _round_up(x, m):
    return ((x + m - 1) // m) * m


def _largest_tile(n_pad, cap):
    """Largest multiple of LANE that divides n_pad and is <= cap."""
    cap = max(LANE, min(cap, n_pad))
    best = LANE
    for t in range(LANE, cap + 1, LANE):
        if n_pad % t == 0:
            best = t
    return best


def gcn_layer_kernel(mask_ref, h_ref, invdeg_ref, wt_ref, o_ref, acc_ref, *, act):
    """One GCN layer: act(((mask @ H) * inv_deg) @ Wt), K-tiled over neighbors."""
    k = pl.program_id(1)

    @pl.when(k == 0)
    def _init():
        acc_ref[...] = jnp.zeros_like(acc_ref)

    # bf16(0/1 mask) x bf16(features) on the MXU, f32 accumulation.
    # No widening cast: both operands arrive MXU-ready from HBM; the products
    # are exact (mask is 0/1) and the sum is carried in the f32 scratch.
    acc_ref[...] += jnp.dot(
        mask_ref[...], h_ref[...], preferred_element_type=jnp.float32
    )

    @pl.when(k == pl.num_programs(1) - 1)
    def _finalize():
        agg = acc_ref[...] * invdeg_ref[...]                  # (tm, fp) * (tm, 1)
        # Small (tm, fp) x (fp, fp) weight matmul, off the per-K-step path;
        # kept f32 for accuracy.
        logits = jnp.dot(agg, wt_ref[...], preferred_element_type=jnp.float32)
        if act == "relu":
            o_ref[...] = jnp.maximum(logits, 0.0).astype(o_ref.dtype)
        else:  # "sigmoid"
            o_ref[...] = jax.nn.sigmoid(logits).astype(o_ref.dtype)


def _gcn_layer(mask, h, inv_deg, wt, *, act, tm, tk, out_dtype):
    n_pad = mask.shape[0]
    fp = h.shape[1]
    grid = (n_pad // tm, n_pad // tk)
    kernel = functools.partial(gcn_layer_kernel, act=act)
    return pl.pallas_call(
        kernel,
        out_shape=jax.ShapeDtypeStruct((n_pad, fp), out_dtype),
        grid_spec=pltpu.PrefetchScalarGridSpec(
            num_scalar_prefetch=0,
            grid=grid,
            in_specs=[
                pl.BlockSpec((tm, tk), lambda i, k: (i, k)),   # mask row/K tile (bf16)
                pl.BlockSpec((tk, fp), lambda i, k: (k, 0)),   # features K tile (bf16)
                pl.BlockSpec((tm, 1), lambda i, k: (i, 0)),    # 1/(1+deg) per row (f32)
                pl.BlockSpec((fp, fp), lambda i, k: (0, 0)),   # weights (resident, f32)
            ],
            out_specs=pl.BlockSpec((tm, fp), lambda i, k: (i, 0)),
            scratch_shapes=[pltpu.VMEM((tm, fp), jnp.float32)],
        ),
        compiler_params=pltpu.CompilerParams(
            dimension_semantics=("parallel", "arbitrary"),
        ),
    )(mask, h, inv_deg, wt)


def gcn_forward(A, X, W1, W2, *, tm_cap=1024, tk_cap=1024):
    """A: (N,N), X: (N,x_dim), W1: (h1_dim,x_dim), W2: (classes,h1_dim)."""
    n = A.shape[0]
    x_dim = X.shape[1]
    h1_dim = W1.shape[0]
    classes = W2.shape[0]

    # Feature padding so every tile (incl. the output store) is lane-dense.
    fp = _round_up(max(x_dim, h1_dim, classes), LANE)

    # Row/K tiling of the (n_pad, n_pad) neighbor mask.
    n_pad = _round_up(max(n, 1), LANE)
    tk = _largest_tile(n_pad, tk_cap)
    # Keep >= 2 row tiles (when the graph allows) so v7x's 2 TensorCores both
    # get work on the "parallel" axis; on v5e/v6e (1 TC) this is harmless.
    tm = _largest_tile(n_pad, min(tm_cap, max(LANE, n_pad // 2)))

    # 0/1 neighbor mask stored bf16 (values exact) -> direct bf16 MXU operand,
    # no in-kernel widening cast.  Padded rows/cols are zero and inert.
    # TODO(synk): store the mask as int8 (v5e/v6e) / fp8 (v7x) to halve the
    # dominant HBM stream again once the in-kernel int8->bf16 widening cast is
    # verified on all target generations.
    mask = jnp.zeros((n_pad, n_pad), jnp.bfloat16)
    mask = mask.at[:n, :n].set((A != 0).astype(jnp.bfloat16))

    # Degrees (1 + #neighbors) precomputed once in the wrapper, exact in f32.
    deg = 1.0 + jnp.sum((A != 0).astype(jnp.float32), axis=1)
    inv_deg = jnp.ones((n_pad, 1), jnp.float32).at[:n, 0].set(1.0 / deg)

    # bf16 features (MXU-ready); pre-transposed, zero-padded f32 weights
    # (F.linear(agg, W) == agg @ W.T).
    xp = jnp.zeros((n_pad, fp), jnp.bfloat16).at[:n, :x_dim].set(
        X.astype(jnp.bfloat16))
    w1t = jnp.zeros((fp, fp), jnp.float32).at[:x_dim, :h1_dim].set(
        jnp.transpose(W1).astype(jnp.float32))
    w2t = jnp.zeros((fp, fp), jnp.float32).at[:h1_dim, :classes].set(
        jnp.transpose(W2).astype(jnp.float32))

    # Two pallas_calls: h1 round-trips HBM as bf16 (half the bytes) and is the
    # ready-to-use bf16 MXU operand for layer 2.  Padded h1 rows are relu(0)=0,
    # so layer-2 aggregation is unaffected.
    h1 = _gcn_layer(mask, xp, inv_deg, w1t, act="relu",
                    tm=tm, tk=tk, out_dtype=jnp.bfloat16)
    out = _gcn_layer(mask, h1, inv_deg, w2t, act="sigmoid",
                     tm=tm, tk=tk, out_dtype=jnp.float32)
    return out[:n, :classes]


def kaiming_uniform(key, out_features, in_features):
    # torch.nn.init.kaiming_uniform_(w, a=sqrt(5)) on a (out, in) tensor:
    # bound = sqrt(6 / ((1 + a^2) * fan_in)) = 1 / sqrt(fan_in)
    bound = 1.0 / math.sqrt(in_features)
    return jax.random.uniform(
        key, (out_features, in_features), jnp.float32, -bound, bound
    )


if __name__ == "__main__":
    nodes, x_dim, h1_dim, classes = 8, 16, 32, 4

    root = jax.random.PRNGKey(0)
    k_a, k_x, k_w1, k_w2 = jax.random.split(root, 4)

    # random sparse-ish adjacency (nonzero == edge), deterministic
    A_dense = jax.random.uniform(k_a, (nodes, nodes), jnp.float32)
    A = jnp.where(A_dense > 0.6, A_dense, 0.0)

    X = jax.random.normal(k_x, (nodes, x_dim), jnp.float32)
    W1 = kaiming_uniform(k_w1, h1_dim, x_dim)
    W2 = kaiming_uniform(k_w2, classes, h1_dim)

    out = gcn_forward(A, X, W1, W2)
    jax.block_until_ready(out)

    # bf16-consistent reference in plain JAX: same dtype pipeline as the kernel
    # (bf16 X, bf16 h1, f32 everything else), full-precision matmuls.  The only
    # remaining deltas are f32 summation order / MXU pass differences.
    hi = jax.lax.Precision.HIGHEST
    mask_ref = (A != 0.0).astype(jnp.float32)
    inv_deg_ref = 1.0 / (1.0 + jnp.sum(mask_ref, axis=1, keepdims=True))
    xb = X.astype(jnp.bfloat16).astype(jnp.float32)
    h1_ref = jnp.maximum(
        jnp.dot(jnp.dot(mask_ref, xb, precision=hi) * inv_deg_ref,
                W1.T, precision=hi),
        0.0)
    h1b = h1_ref.astype(jnp.bfloat16).astype(jnp.float32)
    ref = jax.nn.sigmoid(
        jnp.dot(jnp.dot(mask_ref, h1b, precision=hi) * inv_deg_ref,
                W2.T, precision=hi))

    assert out.shape == (nodes, classes)
    max_err = float(jnp.max(jnp.abs(out - ref)))
    assert jnp.allclose(out, ref, atol=3e-3, rtol=3e-3), max_err

    print("KERNEL_OK")
</pallas_src>

<mosaic_0001>
module attributes {stable_mosaic.version = 11 : i64} {
  func.func @gcn_layer_kernel(%arg0: i32, %arg1: i32, %arg2: memref<128x128xbf16, #tpu.memory_space<vmem>>, %arg3: memref<128x128xbf16, #tpu.memory_space<vmem>>, %arg4: memref<128x1xf32, #tpu.memory_space<vmem>>, %arg5: memref<128x128xf32, #tpu.memory_space<vmem>>, %arg6: memref<128x128xbf16, #tpu.memory_space<vmem>>, %arg7: memref<128x128xf32, #tpu.memory_space<vmem>>) attributes {dimension_semantics = [#tpu.dimension_semantics<parallel>, #tpu.dimension_semantics<arbitrary>], iteration_bounds = array<i64: 1, 1>, scalar_prefetch = 0 : i64, scratch_operands = 1 : i64, tpu.core_type = #tpu.core_type<tc>, window_params = [{transform_indices = @transform_0, window_bounds = array<i64: 128, 128>}, {transform_indices = @transform_1, window_bounds = array<i64: 128, 128>}, {transform_indices = @transform_2, window_bounds = array<i64: 128, 1>}, {pipeline_mode = #tpu.pipeline_mode<synchronous>, transform_indices = @transform_3, window_bounds = array<i64: 128, 128>}, {transform_indices = @transform_4, window_bounds = array<i64: 128, 128>}]} {
    %c0_i32 = arith.constant 0 : i32
    %0 = arith.cmpi eq, %arg1, %c0_i32 : i32
    %1 = arith.extui %0 : i1 to i32
    %c0_i32_0 = arith.constant 0 : i32
    %2 = arith.cmpi ne, %1, %c0_i32_0 : i32
    scf.if %2 {
      %cst_10 = arith.constant 0.000000e+00 : f32
      %12 = vector.broadcast %cst_10 : f32 to vector<128x128xf32>
      %c0_11 = arith.constant 0 : index
      %c0_12 = arith.constant 0 : index
      %13 = vector.load %arg7[%c0_11, %c0_12] : memref<128x128xf32, #tpu.memory_space<vmem>>, vector<128x128xf32>
      tpu.vector_store %arg7[%c0_11, %c0_12], %12 {strides = array<i32>} : memref<128x128xf32, #tpu.memory_space<vmem>>, vector<128x128xf32>,
    } else {
    }
    %c0 = arith.constant 0 : index
    %c0_1 = arith.constant 0 : index
    %3 = vector.load %arg7[%c0, %c0_1] : memref<128x128xf32, #tpu.memory_space<vmem>>, vector<128x128xf32>
    %c0_2 = arith.constant 0 : index
    %c0_3 = arith.constant 0 : index
    %4 = vector.load %arg2[%c0_2, %c0_3] : memref<128x128xbf16, #tpu.memory_space<vmem>>, vector<128x128xbf16>
    %c0_4 = arith.constant 0 : index
    %c0_5 = arith.constant 0 : index
    %5 = vector.load %arg3[%c0_4, %c0_5] : memref<128x128xbf16, #tpu.memory_space<vmem>>, vector<128x128xbf16>
    %cst = arith.constant dense<0.000000e+00> : vector<128x128xf32>
    %6 = tpu.matmul %4, %5, %cst {dimension_numbers = #tpu.dot_dimension_numbers<[1], [0], [0], [1], [0, 0, 1, 1], [], []>} : vector<128x128xbf16>, vector<128x128xbf16>, vector<128x128xf32> -> vector<128x128xf32>
    %7 = arith.addf %3, %6 : vector<128x128xf32>
    %c0_6 = arith.constant 0 : index
    %c0_7 = arith.constant 0 : index
    %8 = vector.load %arg7[%c0_6, %c0_7] : memref<128x128xf32, #tpu.memory_space<vmem>>, vector<128x128xf32>
    tpu.vector_store %arg7[%c0_6, %c0_7], %7 {strides = array<i32>} : memref<128x128xf32, #tpu.memory_space<vmem>>, vector<128x128xf32>,
    %c0_i32_8 = arith.constant 0 : i32
    %9 = arith.cmpi eq, %arg1, %c0_i32_8 : i32
    %10 = arith.extui %9 : i1 to i32
    %c0_i32_9 = arith.constant 0 : i32
    %11 = arith.cmpi ne, %10, %c0_i32_9 : i32
    scf.if %11 {
      %c0_10 = arith.constant 0 : index
      %c0_11 = arith.constant 0 : index
      %12 = vector.load %arg7[%c0_10, %c0_11] : memref<128x128xf32, #tpu.memory_space<vmem>>, vector<128x128xf32>
      %c0_12 = arith.constant 0 : index
      %c0_13 = arith.constant 0 : index
      %13 = vector.load %arg4[%c0_12, %c0_13] : memref<128x1xf32, #tpu.memory_space<vmem>>, vector<128x1xf32>
      %14 = vector.broadcast %13 : vector<128x1xf32> to vector<128x128xf32>
      %15 = arith.mulf %12, %14 : vector<128x128xf32>
      %c0_14 = arith.constant 0 : index
      %c0_15 = arith.constant 0 : index
      %16 = vector.load %arg5[%c0_14, %c0_15] : memref<128x128xf32, #tpu.memory_space<vmem>>, vector<128x128xf32>
      %cst_16 = arith.constant dense<0.000000e+00> : vector<128x128xf32>
      %17 = tpu.matmul %15, %16, %cst_16 {dimension_numbers = #tpu.dot_dimension_numbers<[1], [0], [0], [1], [0, 0, 1, 1], [], []>} : vector<128x128xf32>, vector<128x128xf32>, vector<128x128xf32> -> vector<128x128xf32>
      %cst_17 = arith.constant 0.000000e+00 : f32
      %18 = vector.broadcast %cst_17 : f32 to vector<128x128xf32>
      %19 = arith.maximumf %17, %18 : vector<128x128xf32>
      %20 = arith.truncf %19 : vector<128x128xf32> to vector<128x128xbf16>
      %c0_18 = arith.constant 0 : index
      %c0_19 = arith.constant 0 : index
      %21 = vector.load %arg6[%c0_18, %c0_19] : memref<128x128xbf16, #tpu.memory_space<vmem>>, vector<128x128xbf16>
      tpu.vector_store %arg6[%c0_18, %c0_19], %20 {strides = array<i32>} : memref<128x128xbf16, #tpu.memory_space<vmem>>, vector<128x128xbf16>,
    } else {
    }
    return
  }
  func.func @transform_0(%arg0: i32, %arg1: i32) -> (i32, i32) {
    %c0_i32 = arith.constant 0 : i32
    return %arg0, %arg1 : i32, i32
  }
  func.func @transform_1(%arg0: i32, %arg1: i32) -> (i32, i32) {
    %c0_i32 = arith.constant 0 : i32
    %c0_i32_0 = arith.constant 0 : i32
    return %arg1, %c0_i32 : i32, i32
  }
  func.func @transform_2(%arg0: i32, %arg1: i32) -> (i32, i32) {
    %c0_i32 = arith.constant 0 : i32
    %c0_i32_0 = arith.constant 0 : i32
    return %arg0, %c0_i32 : i32, i32
  }
  func.func @transform_3(%arg0: i32, %arg1: i32) -> (i32, i32) {
    %c0_i32 = arith.constant 0 : i32
    %c0_i32_0 = arith.constant 0 : i32
    %c0_i32_1 = arith.constant 0 : i32
    return %c0_i32, %c0_i32_0 : i32, i32
  }
  func.func @transform_4(%arg0: i32, %arg1: i32) -> (i32, i32) {
    %c0_i32 = arith.constant 0 : i32
    %c0_i32_0 = arith.constant 0 : i32
    return %arg0, %c0_i32 : i32, i32
  }
}

</mosaic_0001>

<llo_original>
// kernel: tpu_custom_call.1
$region0: #{tpu_custom_call.1}
  #allocation0 [shape = 'u32[]', space=smem, size = 0x4, offset = 0x4, fixed_abs, tag = 'smem constant byte address 0x4 - core index']
  #allocation1 [shape = 'u32[144,128]{1,0:T(1,128)}', space=vmem, size = 0x12000, scoped, tag = 'internal scratch']
  #allocation2 [shape = 'f32[128,128]{1,0:T(8,128)}', space=vmem, size = 0x10000, scoped, tag = 'scratch operand']
  %s0 = inlined_call_operand.hbm [shape: bf16[128,128], index: 0, kind: input, shape index: {}]
  %s1 = inlined_call_operand.hbm [shape: bf16[128,128], index: 1, kind: input, shape index: {}]
  %s2 = inlined_call_operand.vmem [shape: f32[128,1], index: 2, kind: input, shape index: {}]
  %s3 = inlined_call_operand.vmem [shape: f32[128,128], index: 3, kind: input, shape index: {}]
  %s4 = inlined_call_operand.hbm [shape: bf16[128,128], index: 4, kind: output, shape index: {}]
  %s5 = sld [smem:[#allocation0]]
  $region42: #{tpu_custom_call.1} parent=0
    _
  %s7 = ssub.s32 1, %s5
  %s8 = scalar_select 0, %s7, %s5
  $region1: #{tpu_custom_call.1} parent=0
    #allocation3 [shape = 'u8[32768]{0}', space=vmem, size = 0x8000, scoped, tag = 'input window, operand 0, single buffered']
    #allocation4 [shape = 's32[1]{0}', space=sflag, size = 0x4, scoped, tag = 'scoped memory for tpu_custom_call.1']
    #allocation5 [shape = 's32[1]{0}', space=sflag, size = 0x4, scoped, tag = 'scoped memory for tpu_custom_call.1']
    #allocation6 [shape = 'u8[32768]{0}', space=vmem, size = 0x8000, scoped, tag = 'input window, operand 1, single buffered']
    #allocation7 [shape = 's32[1]{0}', space=sflag, size = 0x4, scoped, tag = 'scoped memory for tpu_custom_call.1']
    #allocation8 [shape = 'u8[32768]{0}', space=vmem, size = 0x8000, scoped, tag = 'output window, operand 0, single buffered']
    %9 = vsyncpa [#allocation4], 0
    %10 = vsyncpa [#allocation7], 0
    %11 = vsyncpa [#allocation5], 0
    // Predicated region
    $region2: #{tpu_custom_call.1} parent=1 // pred_check
      _
    $region3: #{tpu_custom_call.1} parent=1 // pred_check_branch
      %13 = sbr.rel (0) target = $region5
    $region4: #{tpu_custom_call.1} parent=1 // pred_region
      %s15 = ssub.s32 1024, 1024
      %16 = vsyncadd [#allocation4], %s15
      %s17 = sshll.u32 [#allocation3], 4
      %s18 = int_to_ptr.vmem [resolvable:$true] %s17
      %23 = dma.hbm_to_vmem [thread:$0]  %s0, 1024, %s18, [#allocation4], 64, 64, 4
    $region5: #{tpu_custom_call.1} parent=1 // pred_fallthru
      _
    // Predicated region
    $region6: #{tpu_custom_call.1} parent=1 // pred_check
      _
    $region7: #{tpu_custom_call.1} parent=1 // pred_check_branch
      %25 = sbr.rel (0) target = $region9
    $region8: #{tpu_custom_call.1} parent=1 // pred_region
      %s27 = ssub.s32 1024, 1024
      %28 = vsyncadd [#allocation7], %s27
      %s29 = sshll.u32 [#allocation6], 4
      %s30 = int_to_ptr.vmem [resolvable:$true] %s29
      %35 = dma.hbm_to_vmem [thread:$0]  %s1, 1024, %s30, [#allocation7], 64, 64, 4
    $region9: #{tpu_custom_call.1} parent=1 // pred_fallthru
      _
    // Predicated region
    $region10: #{tpu_custom_call.1} parent=1 // pred_check
      _
    $region11: #{tpu_custom_call.1} parent=1 // pred_check_branch
      %37 = sbr.rel (0) target = $region13
    $region12: #{tpu_custom_call.1} parent=1 // pred_region
      _
    $region13: #{tpu_custom_call.1} parent=1 // pred_fallthru
      _
    // Predicated region
    $region14: #{tpu_custom_call.1} parent=1 // pred_check
      _
    $region15: #{tpu_custom_call.1} parent=1 // pred_check_branch
      %39 = sbr.rel (0) target = $region17
    $region16: #{tpu_custom_call.1} parent=1 // pred_region
      _
    $region17: #{tpu_custom_call.1} parent=1 // pred_fallthru
      _
    // Predicated region
    $region18: #{tpu_custom_call.1} parent=1 // pred_check
      _
    $region19: #{tpu_custom_call.1} parent=1 // pred_check_branch
      %41 = sbr.rel (0) target = $region21
    $region20: #{tpu_custom_call.1} parent=1 // pred_region
      %42 = dma.done [#allocation4], 1024
    $region21: #{tpu_custom_call.1} parent=1 // pred_fallthru
      _
    // Predicated region
    $region22: #{tpu_custom_call.1} parent=1 // pred_check
      _
    $region23: #{tpu_custom_call.1} parent=1 // pred_check_branch
      %44 = sbr.rel (0) target = $region25
    $region24: #{tpu_custom_call.1} parent=1 // pred_region
      %45 = dma.done [#allocation7], 1024
    $region25: #{tpu_custom_call.1} parent=1 // pred_fallthru
      _
    %p47 = scmp.eq.s32.totalorder 0, 0
    // Predicated region
    $region26: #{tpu_custom_call.1} parent=1 // pred_check
      %p48 = pneg %p47
    $region27: #{tpu_custom_call.1} parent=1 // pred_check_branch
      %50 = sbr.rel (%p48) target = $region29
    $region28: #{tpu_custom_call.1} parent=1 // pred_region
      %51 = vst [vmem:[#allocation2] sm:$0xff] 0.0
      %52 = vst [vmem:[#allocation2 + $0x8] sm:$0xff] 0.0
      %53 = vst [vmem:[#allocation2 + $0x10] sm:$0xff] 0.0
      %54 = vst [vmem:[#allocation2 + $0x18] sm:$0xff] 0.0
      %55 = vst [vmem:[#allocation2 + $0x20] sm:$0xff] 0.0
      %56 = vst [vmem:[#allocation2 + $0x28] sm:$0xff] 0.0
      %57 = vst [vmem:[#allocation2 + $0x30] sm:$0xff] 0.0
      %58 = vst [vmem:[#allocation2 + $0x38] sm:$0xff] 0.0
      %59 = vst [vmem:[#allocation2 + $0x40] sm:$0xff] 0.0
      %60 = vst [vmem:[#allocation2 + $0x48] sm:$0xff] 0.0
      %61 = vst [vmem:[#allocation2 + $0x50] sm:$0xff] 0.0
      %62 = vst [vmem:[#allocation2 + $0x58] sm:$0xff] 0.0
      %63 = vst [vmem:[#allocation2 + $0x60] sm:$0xff] 0.0
      %64 = vst [vmem:[#allocation2 + $0x68] sm:$0xff] 0.0
      %65 = vst [vmem:[#allocation2 + $0x70] sm:$0xff] 0.0
      %66 = vst [vmem:[#allocation2 + $0x78] sm:$0xff] 0.0
    $region29: #{tpu_custom_call.1} parent=1 // pred_fallthru
      _
    %v67 = vld [vmem:[#allocation2] sm:$0xff]
    %v68 = vld [vmem:[#allocation2 + $0x8] sm:$0xff]
    %v69 = vld [vmem:[#allocation2 + $0x10] sm:$0xff]
    %v70 = vld [vmem:[#allocation2 + $0x18] sm:$0xff]
    %v71 = vld [vmem:[#allocation2 + $0x20] sm:$0xff]
    %v72 = vld [vmem:[#allocation2 + $0x28] sm:$0xff]
    %v73 = vld [vmem:[#allocation2 + $0x30] sm:$0xff]
    %v74 = vld [vmem:[#allocation2 + $0x38] sm:$0xff]
    %v75 = vld [vmem:[#allocation2 + $0x40] sm:$0xff]
    %v76 = vld [vmem:[#allocation2 + $0x48] sm:$0xff]
    %v77 = vld [vmem:[#allocation2 + $0x50] sm:$0xff]
    %v78 = vld [vmem:[#allocation2 + $0x58] sm:$0xff]
    %v79 = vld [vmem:[#allocation2 + $0x60] sm:$0xff]
    %v80 = vld [vmem:[#allocation2 + $0x68] sm:$0xff]
    %v81 = vld [vmem:[#allocation2 + $0x70] sm:$0xff]
    %v82 = vld [vmem:[#allocation2 + $0x78] sm:$0xff]
    %v83 = vld [vmem:[#allocation3] sm:$0xf]
    %v84 = vld [vmem:[#allocation3 + $0x4] sm:$0xf]
    %v85 = vld [vmem:[#allocation3 + $0x8] sm:$0xf]
    %v86 = vld [vmem:[#allocation3 + $0xc] sm:$0xf]
    %v87 = vld [vmem:[#allocation3 + $0x10] sm:$0xf]
    %v88 = vld [vmem:[#allocation3 + $0x14] sm:$0xf]
    %v89 = vld [vmem:[#allocation3 + $0x18] sm:$0xf]
    %v90 = vld [vmem:[#allocation3 + $0x1c] sm:$0xf]
    %v91 = vld [vmem:[#allocation3 + $0x20] sm:$0xf]
    %v92 = vld [vmem:[#allocation3 + $0x24] sm:$0xf]
    %v93 = vld [vmem:[#allocation3 + $0x28] sm:$0xf]
    %v94 = vld [vmem:[#allocation3 + $0x2c] sm:$0xf]
    %v95 = vld [vmem:[#allocation3 + $0x30] sm:$0xf]
    %v96 = vld [vmem:[#allocation3 + $0x34] sm:$0xf]
    %v97 = vld [vmem:[#allocation3 + $0x38] sm:$0xf]
    %v98 = vld [vmem:[#allocation3 + $0x3c] sm:$0xf]
    %v99 = vld [vmem:[#allocation6] sm:$0xf]
    %v100 = vld [vmem:[#allocation6 + $0x4] sm:$0xf]
    %v101 = vld [vmem:[#allocation6 + $0x8] sm:$0xf]
    %v102 = vld [vmem:[#allocation6 + $0xc] sm:$0xf]
    %v103 = vld [vmem:[#allocation6 + $0x10] sm:$0xf]
    %v104 = vld [vmem:[#allocation6 + $0x14] sm:$0xf]
    %v105 = vld [vmem:[#allocation6 + $0x18] sm:$0xf]
    %v106 = vld [vmem:[#allocation6 + $0x1c] sm:$0xf]
    %v107 = vld [vmem:[#allocation6 + $0x20] sm:$0xf]
    %v108 = vld [vmem:[#allocation6 + $0x24] sm:$0xf]
    %v109 = vld [vmem:[#allocation6 + $0x28] sm:$0xf]
    %v110 = vld [vmem:[#allocation6 + $0x2c] sm:$0xf]
    %v111 = vld [vmem:[#allocation6 + $0x30] sm:$0xf]
    %v112 = vld [vmem:[#allocation6 + $0x34] sm:$0xf]
    %v113 = vld [vmem:[#allocation6 + $0x38] sm:$0xf]
    %v114 = vld [vmem:[#allocation6 + $0x3c] sm:$0xf]
    %v131 = vunpack.c.l.b16 %v83
    %v132 = vunpack.c.l.b16 %v84
    %v133 = vunpack.c.l.b16 %v85
    %v134 = vunpack.c.l.b16 %v86
    %v135 = vunpack.c.l.b16 %v87
    %v136 = vunpack.c.l.b16 %v88
    %v137 = vunpack.c.l.b16 %v89
    %v138 = vunpack.c.l.b16 %v90
    %v139 = vunpack.c.l.b16 %v91
    %v140 = vunpack.c.l.b16 %v92
    %v141 = vunpack.c.l.b16 %v93
    %v142 = vunpack.c.l.b16 %v94
    %v143 = vunpack.c.l.b16 %v95
    %v144 = vunpack.c.l.b16 %v96
    %v145 = vunpack.c.l.b16 %v97
    %v146 = vunpack.c.l.b16 %v98
    %v147 = vpack.c.b16 %v132, %v131
    %v148 = vpack.c.b16 %v134, %v133
    %v149 = vpack.c.b16 %v136, %v135
    %v150 = vpack.c.b16 %v138, %v137
    %v151 = vpack.c.b16 %v140, %v139
    %v152 = vpack.c.b16 %v142, %v141
    %v153 = vpack.c.b16 %v144, %v143
    %v154 = vpack.c.b16 %v146, %v145
    %v179 = vunpack.c.l.b16 %v99
    %v180 = vunpack.c.l.b16 %v100
    %v181 = vunpack.c.l.b16 %v101
    %v182 = vunpack.c.l.b16 %v102
    %v183 = vunpack.c.l.b16 %v103
    %v184 = vunpack.c.l.b16 %v104
    %v185 = vunpack.c.l.b16 %v105
    %v186 = vunpack.c.l.b16 %v106
    %v187 = vunpack.c.l.b16 %v107
    %v188 = vunpack.c.l.b16 %v108
    %v189 = vunpack.c.l.b16 %v109
    %v190 = vunpack.c.l.b16 %v110
    %v191 = vunpack.c.l.b16 %v111
    %v192 = vunpack.c.l.b16 %v112
    %v193 = vunpack.c.l.b16 %v113
    %v194 = vunpack.c.l.b16 %v114
    %v195 = vpack.c.b16 %v180, %v179
    %v196 = vpack.c.b16 %v182, %v181
    %v197 = vpack.c.b16 %v184, %v183
    %v198 = vpack.c.b16 %v186, %v185
    %v199 = vpack.c.b16 %v188, %v187
    %v200 = vpack.c.b16 %v190, %v189
    %v201 = vpack.c.b16 %v192, %v191
    %v202 = vpack.c.b16 %v194, %v193
    %211 = vmatprep.subr.bf16.mxu0 0
    %212 = vmatpush1.bf16.msra.mxu0 %v195
    %213 = vmatprep.subr.bf16.mxu0 0
    %214 = vmatpush1.bf16.msra.mxu0 %v196
    %215 = vmatprep.subr.bf16.mxu0 0
    %216 = vmatpush1.bf16.msra.mxu0 %v197
    %217 = vmatprep.subr.bf16.mxu0 0
    %218 = vmatpush1.bf16.msra.mxu0 %v198
    %219 = vmatprep.subr.bf16.mxu0 0
    %220 = vmatpush1.bf16.msra.mxu0 %v199
    %221 = vmatprep.subr.bf16.mxu0 0
    %222 = vmatpush1.bf16.msra.mxu0 %v200
    %223 = vmatprep.subr.bf16.mxu0 0
    %224 = vmatpush1.bf16.msra.mxu0 %v201
    %225 = vmatprep.subr.bf16.mxu0 0
    %226 = vmatpush1.bf16.msra.mxu0 %v202
    %227 = vmatprep.subr.bf16.mxu0 0
    %228 = vmatpush1.bf16.msra.mxu0 0
    %229 = vmatprep.subr.bf16.mxu0 0
    %230 = vmatpush1.bf16.msra.mxu0 0
    %231 = vmatprep.subr.bf16.mxu0 0
    %232 = vmatpush1.bf16.msra.mxu0 0
    %233 = vmatprep.subr.bf16.mxu0 0
    %234 = vmatpush1.bf16.msra.mxu0 0
    %235 = vmatprep.subr.bf16.mxu0 0
    %236 = vmatpush1.bf16.msra.mxu0 0
    %237 = vmatprep.subr.bf16.mxu0 0
    %238 = vmatpush1.bf16.msra.mxu0 0
    %239 = vmatprep.subr.bf16.mxu0 0
    %240 = vmatpush1.bf16.msra.mxu0 0
    %241 = vmatprep.subr.bf16.mxu0 0
    %242 = vmatpush1.bf16.msra.mxu0 0
    %243 = vmatprep.mubr.bf16.mxu0 0
    %244 = vmatmul.mubr.bf16.gmra.mrb[0].mxu0 %v147
    %v245 = vpop.f32.mrb[0].mxu0
    %v246 = vadd.f32 0.0, %v245
    %v247 = vpop.f32.mrb[0].mxu0
    %v248 = vpop.f32.mrb[0].mxu0
    %v249 = vadd.f32 0.0, %v248
    %v250 = vpop.f32.mrb[0].mxu0
    %251 = vmatprep.mubr.bf16.mxu0 0
    %252 = vmatmul.mubr.bf16.gmra.mrb[0].mxu0 %v148
    %v253 = vpop.f32.mrb[0].mxu0
    %v254 = vadd.f32 0.0, %v253
    %v255 = vpop.f32.mrb[0].mxu0
    %v256 = vpop.f32.mrb[0].mxu0
    %v257 = vadd.f32 0.0, %v256
    %v258 = vpop.f32.mrb[0].mxu0
    %259 = vmatprep.mubr.bf16.mxu0 0
    %260 = vmatmul.mubr.bf16.gmra.mrb[0].mxu0 %v149
    %v261 = vpop.f32.mrb[0].mxu0
    %v262 = vadd.f32 0.0, %v261
    %v263 = vpop.f32.mrb[0].mxu0
    %v264 = vpop.f32.mrb[0].mxu0
    %v265 = vadd.f32 0.0, %v264
    %v266 = vpop.f32.mrb[0].mxu0
    %267 = vmatprep.mubr.bf16.mxu0 0
    %268 = vmatmul.mubr.bf16.gmra.mrb[0].mxu0 %v150
    %v269 = vpop.f32.mrb[0].mxu0
    %v270 = vadd.f32 0.0, %v269
    %v271 = vpop.f32.mrb[0].mxu0
    %v272 = vpop.f32.mrb[0].mxu0
    %v273 = vadd.f32 0.0, %v272
    %v274 = vpop.f32.mrb[0].mxu0
    %275 = vmatprep.mubr.bf16.mxu0 0
    %276 = vmatmul.mubr.bf16.gmra.mrb[0].mxu0 %v151
    %v277 = vpop.f32.mrb[0].mxu0
    %v278 = vadd.f32 0.0, %v277
    %v279 = vpop.f32.mrb[0].mxu0
    %v280 = vpop.f32.mrb[0].mxu0
    %v281 = vadd.f32 0.0, %v280
    %v282 = vpop.f32.mrb[0].mxu0
    %283 = vmatprep.mubr.bf16.mxu0 0
    %284 = vmatmul.mubr.bf16.gmra.mrb[0].mxu0 %v152
    %v285 = vpop.f32.mrb[0].mxu0
    %v286 = vadd.f32 0.0, %v285
    %v287 = vpop.f32.mrb[0].mxu0
    %v288 = vpop.f32.mrb[0].mxu0
    %v289 = vadd.f32 0.0, %v288
    %v290 = vpop.f32.mrb[0].mxu0
    %291 = vmatprep.mubr.bf16.mxu0 0
    %292 = vmatmul.mubr.bf16.gmra.mrb[0].mxu0 %v153
    %v293 = vpop.f32.mrb[0].mxu0
    %v294 = vadd.f32 0.0, %v293
    %v295 = vpop.f32.mrb[0].mxu0
    %v296 = vpop.f32.mrb[0].mxu0
    %v297 = vadd.f32 0.0, %v296
    %v298 = vpop.f32.mrb[0].mxu0
    %299 = vmatprep.mubr.bf16.mxu0 0
    %300 = vmatmul.mubr.bf16.gmra.mrb[0].mxu0 %v154
    %v301 = vpop.f32.mrb[0].mxu0
    %v302 = vadd.f32 0.0, %v301
    %v303 = vpop.f32.mrb[0].mxu0
    %v304 = vpop.f32.mrb[0].mxu0
    %v305 = vadd.f32 0.0, %v304
    %v306 = vpop.f32.mrb[0].mxu0
    %307 = vdwg.mxu0
    %v308 = vadd.f32 %v67, %v246
    %v309 = vadd.f32 %v68, %v249
    %v310 = vadd.f32 %v69, %v254
    %v311 = vadd.f32 %v70, %v257
    %v312 = vadd.f32 %v71, %v262
    %v313 = vadd.f32 %v72, %v265
    %v314 = vadd.f32 %v73, %v270
    %v315 = vadd.f32 %v74, %v273
    %v316 = vadd.f32 %v75, %v278
    %v317 = vadd.f32 %v76, %v281
    %v318 = vadd.f32 %v77, %v286
    %v319 = vadd.f32 %v78, %v289
    %v320 = vadd.f32 %v79, %v294
    %v321 = vadd.f32 %v80, %v297
    %v322 = vadd.f32 %v81, %v302
    %v323 = vadd.f32 %v82, %v305
    %324 = vst [vmem:[#allocation2] sm:$0xff] %v308
    %325 = vst [vmem:[#allocation2 + $0x8] sm:$0xff] %v309
    %326 = vst [vmem:[#allocation2 + $0x10] sm:$0xff] %v310
    %327 = vst [vmem:[#allocation2 + $0x18] sm:$0xff] %v311
    %328 = vst [vmem:[#allocation2 + $0x20] sm:$0xff] %v312
    %329 = vst [vmem:[#allocation2 + $0x28] sm:$0xff] %v313
    %330 = vst [vmem:[#allocation2 + $0x30] sm:$0xff] %v314
    %331 = vst [vmem:[#allocation2 + $0x38] sm:$0xff] %v315
    %332 = vst [vmem:[#allocation2 + $0x40] sm:$0xff] %v316
    %333 = vst [vmem:[#allocation2 + $0x48] sm:$0xff] %v317
    %334 = vst [vmem:[#allocation2 + $0x50] sm:$0xff] %v318
    %335 = vst [vmem:[#allocation2 + $0x58] sm:$0xff] %v319
    %336 = vst [vmem:[#allocation2 + $0x60] sm:$0xff] %v320
    %337 = vst [vmem:[#allocation2 + $0x68] sm:$0xff] %v321
    %338 = vst [vmem:[#allocation2 + $0x70] sm:$0xff] %v322
    %339 = vst [vmem:[#allocation2 + $0x78] sm:$0xff] %v323
    // Predicated region
    $region30: #{tpu_custom_call.1} parent=1 // pred_check
      %p340 = pneg %p47
    $region31: #{tpu_custom_call.1} parent=1 // pred_check_branch
      %342 = sbr.rel (%p340) target = $region33
    $region32: #{tpu_custom_call.1} parent=1 // pred_region
      %v343 = vld [vmem:[#allocation2] sm:$0xff]
      %v344 = vld [vmem:[#allocation2 + $0x8] sm:$0xff]
      %v345 = vld [vmem:[#allocation2 + $0x10] sm:$0xff]
      %v346 = vld [vmem:[#allocation2 + $0x18] sm:$0xff]
      %v347 = vld [vmem:[#allocation2 + $0x20] sm:$0xff]
      %v348 = vld [vmem:[#allocation2 + $0x28] sm:$0xff]
      %v349 = vld [vmem:[#allocation2 + $0x30] sm:$0xff]
      %v350 = vld [vmem:[#allocation2 + $0x38] sm:$0xff]
      %v351 = vld [vmem:[#allocation2 + $0x40] sm:$0xff]
      %v352 = vld [vmem:[#allocation2 + $0x48] sm:$0xff]
      %v353 = vld [vmem:[#allocation2 + $0x50] sm:$0xff]
      %v354 = vld [vmem:[#allocation2 + $0x58] sm:$0xff]
      %v355 = vld [vmem:[#allocation2 + $0x60] sm:$0xff]
      %v356 = vld [vmem:[#allocation2 + $0x68] sm:$0xff]
      %v357 = vld [vmem:[#allocation2 + $0x70] sm:$0xff]
      %v358 = vld [vmem:[#allocation2 + $0x78] sm:$0xff]
      %v359 = vld [vmem:[%s2] sm:$0xff]
      %v360 = vld [vmem:[%s2 + $0x8] sm:$0xff]
      %v361 = vld [vmem:[%s2 + $0x10] sm:$0xff]
      %v362 = vld [vmem:[%s2 + $0x18] sm:$0xff]
      %v363 = vld [vmem:[%s2 + $0x20] sm:$0xff]
      %v364 = vld [vmem:[%s2 + $0x28] sm:$0xff]
      %v365 = vld [vmem:[%s2 + $0x30] sm:$0xff]
      %v366 = vld [vmem:[%s2 + $0x38] sm:$0xff]
      %v367 = vld [vmem:[%s2 + $0x40] sm:$0xff]
      %v368 = vld [vmem:[%s2 + $0x48] sm:$0xff]
      %v369 = vld [vmem:[%s2 + $0x50] sm:$0xff]
      %v370 = vld [vmem:[%s2 + $0x58] sm:$0xff]
      %v371 = vld [vmem:[%s2 + $0x60] sm:$0xff]
      %v372 = vld [vmem:[%s2 + $0x68] sm:$0xff]
      %v373 = vld [vmem:[%s2 + $0x70] sm:$0xff]
      %v374 = vld [vmem:[%s2 + $0x78] sm:$0xff]
      %376 = vset.pattern.permute.xlu0 0
      %377 = vperm.xlu0 %376, %v359
      %v378 = vpop.permute.xlu0 %377
      %381 = vset.pattern.permute.xlu0 0
      %382 = vperm.xlu0 %381, %v360
      %v383 = vpop.permute.xlu0 %382
      %386 = vset.pattern.permute.xlu0 0
      %387 = vperm.xlu0 %386, %v361
      %v388 = vpop.permute.xlu0 %387
      %391 = vset.pattern.permute.xlu0 0
      %392 = vperm.xlu0 %391, %v362
      %v393 = vpop.permute.xlu0 %392
      %396 = vset.pattern.permute.xlu0 0
      %397 = vperm.xlu0 %396, %v363
      %v398 = vpop.permute.xlu0 %397
      %401 = vset.pattern.permute.xlu0 0
      %402 = vperm.xlu0 %401, %v364
      %v403 = vpop.permute.xlu0 %402
      %406 = vset.pattern.permute.xlu0 0
      %407 = vperm.xlu0 %406, %v365
      %v408 = vpop.permute.xlu0 %407
      %411 = vset.pattern.permute.xlu0 0
      %412 = vperm.xlu0 %411, %v366
      %v413 = vpop.permute.xlu0 %412
      %416 = vset.pattern.permute.xlu0 0
      %417 = vperm.xlu0 %416, %v367
      %v418 = vpop.permute.xlu0 %417
      %421 = vset.pattern.permute.xlu0 0
      %422 = vperm.xlu0 %421, %v368
      %v423 = vpop.permute.xlu0 %422
      %426 = vset.pattern.permute.xlu0 0
      %427 = vperm.xlu0 %426, %v369
      %v428 = vpop.permute.xlu0 %427
      %431 = vset.pattern.permute.xlu0 0
      %432 = vperm.xlu0 %431, %v370
      %v433 = vpop.permute.xlu0 %432
      %436 = vset.pattern.permute.xlu0 0
      %437 = vperm.xlu0 %436, %v371
      %v438 = vpop.permute.xlu0 %437
      %441 = vset.pattern.permute.xlu0 0
      %442 = vperm.xlu0 %441, %v372
      %v443 = vpop.permute.xlu0 %442
      %446 = vset.pattern.permute.xlu0 0
      %447 = vperm.xlu0 %446, %v373
      %v448 = vpop.permute.xlu0 %447
      %451 = vset.pattern.permute.xlu0 0
      %452 = vperm.xlu0 %451, %v374
      %v453 = vpop.permute.xlu0 %452
      %v455 = vmul.f32 %v343, %v378
      %v456 = vmul.f32 %v344, %v383
      %v457 = vmul.f32 %v345, %v388
      %v458 = vmul.f32 %v346, %v393
      %v459 = vmul.f32 %v347, %v398
      %v460 = vmul.f32 %v348, %v403
      %v461 = vmul.f32 %v349, %v408
      %v462 = vmul.f32 %v350, %v413
      %v463 = vmul.f32 %v351, %v418
      %v464 = vmul.f32 %v352, %v423
      %v465 = vmul.f32 %v353, %v428
      %v466 = vmul.f32 %v354, %v433
      %v467 = vmul.f32 %v355, %v438
      %v468 = vmul.f32 %v356, %v443
      %v469 = vmul.f32 %v357, %v448
      %v470 = vmul.f32 %v358, %v453
      %v471 = vld [vmem:[%s3] sm:$0xff]
      %v472 = vld [vmem:[%s3 + $0x8] sm:$0xff]
      %v473 = vld [vmem:[%s3 + $0x10] sm:$0xff]
      %v474 = vld [vmem:[%s3 + $0x18] sm:$0xff]
      %v475 = vld [vmem:[%s3 + $0x20] sm:$0xff]
      %v476 = vld [vmem:[%s3 + $0x28] sm:$0xff]
      %v477 = vld [vmem:[%s3 + $0x30] sm:$0xff]
      %v478 = vld [vmem:[%s3 + $0x38] sm:$0xff]
      %v479 = vld [vmem:[%s3 + $0x40] sm:$0xff]
      %v480 = vld [vmem:[%s3 + $0x48] sm:$0xff]
      %v481 = vld [vmem:[%s3 + $0x50] sm:$0xff]
      %v482 = vld [vmem:[%s3 + $0x58] sm:$0xff]
      %v483 = vld [vmem:[%s3 + $0x60] sm:$0xff]
      %v484 = vld [vmem:[%s3 + $0x68] sm:$0xff]
      %v485 = vld [vmem:[%s3 + $0x70] sm:$0xff]
      %v486 = vld [vmem:[%s3 + $0x78] sm:$0xff]
      %487 = vmatprep.subr.mxu0 0.0
      %488 = vmatpush1.msra.mxu0 %v471
      %489 = vmatprep.subr.mxu0 0.0
      %490 = vmatpush1.msra.mxu0 %v472
      %491 = vmatprep.subr.mxu0 0.0
      %492 = vmatpush1.msra.mxu0 %v473
      %493 = vmatprep.subr.mxu0 0.0
      %494 = vmatpush1.msra.mxu0 %v474
      %495 = vmatprep.subr.mxu0 0.0
      %496 = vmatpush1.msra.mxu0 %v475
      %497 = vmatprep.subr.mxu0 0.0
      %498 = vmatpush1.msra.mxu0 %v476
      %499 = vmatprep.subr.mxu0 0.0
      %500 = vmatpush1.msra.mxu0 %v477
      %501 = vmatprep.subr.mxu0 0.0
      %502 = vmatpush1.msra.mxu0 %v478
      %503 = vmatprep.subr.mxu0 0.0
      %504 = vmatpush1.msra.mxu0 %v479
      %505 = vmatprep.subr.mxu0 0.0
      %506 = vmatpush1.msra.mxu0 %v480
      %507 = vmatprep.subr.mxu0 0.0
      %508 = vmatpush1.msra.mxu0 %v481
      %509 = vmatprep.subr.mxu0 0.0
      %510 = vmatpush1.msra.mxu0 %v482
      %511 = vmatprep.subr.mxu0 0.0
      %512 = vmatpush1.msra.mxu0 %v483
      %513 = vmatprep.subr.mxu0 0.0
      %514 = vmatpush1.msra.mxu0 %v484
      %515 = vmatprep.subr.mxu0 0.0
      %516 = vmatpush1.msra.mxu0 %v485
      %517 = vmatprep.subr.mxu0 0.0
      %518 = vmatpush1.msra.mxu0 %v486
      %519 = vmatprep.subr.mxu0 0.0
      %520 = vmatpush1.msra.mxu0 0.0
      %521 = vmatprep.subr.mxu0 0.0
      %522 = vmatpush1.msra.mxu0 0.0
      %523 = vmatprep.subr.mxu0 0.0
      %524 = vmatpush1.msra.mxu0 0.0
      %525 = vmatprep.subr.mxu0 0.0
      %526 = vmatpush1.msra.mxu0 0.0
      %527 = vmatprep.subr.mxu0 0.0
      %528 = vmatpush1.msra.mxu0 0.0
      %529 = vmatprep.subr.mxu0 0.0
      %530 = vmatpush1.msra.mxu0 0.0
      %531 = vmatprep.subr.mxu0 0.0
      %532 = vmatpush1.msra.mxu0 0.0
      %533 = vmatprep.subr.mxu0 0.0
      %534 = vmatpush1.msra.mxu0 0.0
      %535 = vmatprep.subr.mxu0 0.0
      %536 = vmatpush1.msra.mxu0 0.0
      %537 = vmatprep.subr.mxu0 0.0
      %538 = vmatpush1.msra.mxu0 0.0
      %539 = vmatprep.subr.mxu0 0.0
      %540 = vmatpush1.msra.mxu0 0.0
      %541 = vmatprep.subr.mxu0 0.0
      %542 = vmatpush1.msra.mxu0 0.0
      %543 = vmatprep.subr.mxu0 0.0
      %544 = vmatpush1.msra.mxu0 0.0
      %545 = vmatprep.subr.mxu0 0.0
      %546 = vmatpush1.msra.mxu0 0.0
      %547 = vmatprep.subr.mxu0 0.0
      %548 = vmatpush1.msra.mxu0 0.0
      %549 = vmatprep.subr.mxu0 0.0
      %550 = vmatpush1.msra.mxu0 0.0
      %551 = vmatprep.mubr.f32.mxu0 0.0
      %552 = vmatmul.mubr.f32.gmra.mrb[0].mxu0 %v455
      %v553 = vpop.f32.mrb[0].mxu0
      %v554 = vadd.f32 0.0, %v553
      %v555 = vpop.f32.mrb[0].mxu0
      %556 = vmatprep.mubr.f32.mxu0 0.0
      %557 = vmatmul.mubr.f32.gmra.mrb[0].mxu0 %v456
      %v558 = vpop.f32.mrb[0].mxu0
      %v559 = vadd.f32 0.0, %v558
      %v560 = vpop.f32.mrb[0].mxu0
      %561 = vmatprep.mubr.f32.mxu0 0.0
      %562 = vmatmul.mubr.f32.gmra.mrb[0].mxu0 %v457
      %v563 = vpop.f32.mrb[0].mxu0
      %v564 = vadd.f32 0.0, %v563
      %v565 = vpop.f32.mrb[0].mxu0
      %566 = vmatprep.mubr.f32.mxu0 0.0
      %567 = vmatmul.mubr.f32.gmra.mrb[0].mxu0 %v458
      %v568 = vpop.f32.mrb[0].mxu0
      %v569 = vadd.f32 0.0, %v568
      %v570 = vpop.f32.mrb[0].mxu0
      %571 = vmatprep.mubr.f32.mxu0 0.0
      %572 = vmatmul.mubr.f32.gmra.mrb[0].mxu0 %v459
      %v573 = vpop.f32.mrb[0].mxu0
      %v574 = vadd.f32 0.0, %v573
      %v575 = vpop.f32.mrb[0].mxu0
      %576 = vmatprep.mubr.f32.mxu0 0.0
      %577 = vmatmul.mubr.f32.gmra.mrb[0].mxu0 %v460
      %v578 = vpop.f32.mrb[0].mxu0
      %v579 = vadd.f32 0.0, %v578
      %v580 = vpop.f32.mrb[0].mxu0
      %581 = vmatprep.mubr.f32.mxu0 0.0
      %582 = vmatmul.mubr.f32.gmra.mrb[0].mxu0 %v461
      %v583 = vpop.f32.mrb[0].mxu0
      %v584 = vadd.f32 0.0, %v583
      %v585 = vpop.f32.mrb[0].mxu0
      %586 = vmatprep.mubr.f32.mxu0 0.0
      %587 = vmatmul.mubr.f32.gmra.mrb[0].mxu0 %v462
      %v588 = vpop.f32.mrb[0].mxu0
      %v589 = vadd.f32 0.0, %v588
      %v590 = vpop.f32.mrb[0].mxu0
      %591 = vmatprep.mubr.f32.mxu0 0.0
      %592 = vmatmul.mubr.f32.gmra.mrb[0].mxu0 %v463
      %v593 = vpop.f32.mrb[0].mxu0
      %v594 = vadd.f32 0.0, %v593
      %v595 = vpop.f32.mrb[0].mxu0
      %596 = vmatprep.mubr.f32.mxu0 0.0
      %597 = vmatmul.mubr.f32.gmra.mrb[0].mxu0 %v464
      %v598 = vpop.f32.mrb[0].mxu0
      %v599 = vadd.f32 0.0, %v598
      %v600 = vpop.f32.mrb[0].mxu0
      %601 = vmatprep.mubr.f32.mxu0 0.0
      %602 = vmatmul.mubr.f32.gmra.mrb[0].mxu0 %v465
      %v603 = vpop.f32.mrb[0].mxu0
      %v604 = vadd.f32 0.0, %v603
      %v605 = vpop.f32.mrb[0].mxu0
      %606 = vmatprep.mubr.f32.mxu0 0.0
      %607 = vmatmul.mubr.f32.gmra.mrb[0].mxu0 %v466
      %v608 = vpop.f32.mrb[0].mxu0
      %v609 = vadd.f32 0.0, %v608
      %v610 = vpop.f32.mrb[0].mxu0
      %611 = vmatprep.mubr.f32.mxu0 0.0
      %612 = vmatmul.mubr.f32.gmra.mrb[0].mxu0 %v467
      %v613 = vpop.f32.mrb[0].mxu0
      %v614 = vadd.f32 0.0, %v613
      %v615 = vpop.f32.mrb[0].mxu0
      %616 = vmatprep.mubr.f32.mxu0 0.0
      %617 = vmatmul.mubr.f32.gmra.mrb[0].mxu0 %v468
      %v618 = vpop.f32.mrb[0].mxu0
      %v619 = vadd.f32 0.0, %v618
      %v620 = vpop.f32.mrb[0].mxu0
      %621 = vmatprep.mubr.f32.mxu0 0.0
      %622 = vmatmul.mubr.f32.gmra.mrb[0].mxu0 %v469
      %v623 = vpop.f32.mrb[0].mxu0
      %v624 = vadd.f32 0.0, %v623
      %v625 = vpop.f32.mrb[0].mxu0
      %626 = vmatprep.mubr.f32.mxu0 0.0
      %627 = vmatmul.mubr.f32.gmra.mrb[0].mxu0 %v470
      %v628 = vpop.f32.mrb[0].mxu0
      %v629 = vadd.f32 0.0, %v628
      %v630 = vpop.f32.mrb[0].mxu0
      %631 = vdwg.mxu0
      %v632 = vmax.f32 %v554, 0.0
      %v633 = vmax.f32 %v559, 0.0
      %v634 = vmax.f32 %v564, 0.0
      %v635 = vmax.f32 %v569, 0.0
      %v636 = vmax.f32 %v574, 0.0
      %v637 = vmax.f32 %v579, 0.0
      %v638 = vmax.f32 %v584, 0.0
      %v639 = vmax.f32 %v589, 0.0
      %v640 = vmax.f32 %v594, 0.0
      %v641 = vmax.f32 %v599, 0.0
      %v642 = vmax.f32 %v604, 0.0
      %v643 = vmax.f32 %v609, 0.0
      %v644 = vmax.f32 %v614, 0.0
      %v645 = vmax.f32 %v619, 0.0
      %v646 = vmax.f32 %v624, 0.0
      %v647 = vmax.f32 %v629, 0.0
      %v648 = vpack.c.bf16 %v633, %v632
      %v649 = vpack.c.bf16 %v635, %v634
      %v650 = vpack.c.bf16 %v637, %v636
      %v651 = vpack.c.bf16 %v639, %v638
      %v652 = vpack.c.bf16 %v641, %v640
      %v653 = vpack.c.bf16 %v643, %v642
      %v654 = vpack.c.bf16 %v645, %v644
      %v655 = vpack.c.bf16 %v647, %v646
      %v664 = vunpack.c.l.b16 %v648
      %v665 = vunpack.c.h.b16 %v648
      %v666 = vunpack.c.l.b16 %v649
      %v667 = vunpack.c.h.b16 %v649
      %v668 = vunpack.c.l.b16 %v650
      %v669 = vunpack.c.h.b16 %v650
      %v670 = vunpack.c.l.b16 %v651
      %v671 = vunpack.c.h.b16 %v651
      %v672 = vunpack.c.l.b16 %v652
      %v673 = vunpack.c.h.b16 %v652
      %v674 = vunpack.c.l.b16 %v653
      %v675 = vunpack.c.h.b16 %v653
      %v676 = vunpack.c.l.b16 %v654
      %v677 = vunpack.c.h.b16 %v654
      %v678 = vunpack.c.l.b16 %v655
      %v679 = vunpack.c.h.b16 %v655
      %v680 = vpack.c.b16 %v664, %v664
      %v681 = vpack.c.b16 %v665, %v665
      %v682 = vpack.c.b16 %v666, %v666
      %v683 = vpack.c.b16 %v667, %v667
      %v684 = vpack.c.b16 %v668, %v668
      %v685 = vpack.c.b16 %v669, %v669
      %v686 = vpack.c.b16 %v670, %v670
      %v687 = vpack.c.b16 %v671, %v671
      %v688 = vpack.c.b16 %v672, %v672
      %v689 = vpack.c.b16 %v673, %v673
      %v690 = vpack.c.b16 %v674, %v674
      %v691 = vpack.c.b16 %v675, %v675
      %v692 = vpack.c.b16 %v676, %v676
      %v693 = vpack.c.b16 %v677, %v677
      %v694 = vpack.c.b16 %v678, %v678
      %v695 = vpack.c.b16 %v679, %v679
      %712 = vst [vmem:[#allocation8] sm:$0xf] %v680
      %713 = vst [vmem:[#allocation8 + $0x4] sm:$0xf] %v681
      %714 = vst [vmem:[#allocation8 + $0x8] sm:$0xf] %v682
      %715 = vst [vmem:[#allocation8 + $0xc] sm:$0xf] %v683
      %716 = vst [vmem:[#allocation8 + $0x10] sm:$0xf] %v684
      %717 = vst [vmem:[#allocation8 + $0x14] sm:$0xf] %v685
      %718 = vst [vmem:[#allocation8 + $0x18] sm:$0xf] %v686
      %719 = vst [vmem:[#allocation8 + $0x1c] sm:$0xf] %v687
      %720 = vst [vmem:[#allocation8 + $0x20] sm:$0xf] %v688
      %721 = vst [vmem:[#allocation8 + $0x24] sm:$0xf] %v689
      %722 = vst [vmem:[#allocation8 + $0x28] sm:$0xf] %v690
      %723 = vst [vmem:[#allocation8 + $0x2c] sm:$0xf] %v691
      %724 = vst [vmem:[#allocation8 + $0x30] sm:$0xf] %v692
      %725 = vst [vmem:[#allocation8 + $0x34] sm:$0xf] %v693
      %726 = vst [vmem:[#allocation8 + $0x38] sm:$0xf] %v694
      %727 = vst [vmem:[#allocation8 + $0x3c] sm:$0xf] %v695
    $region33: #{tpu_custom_call.1} parent=1 // pred_fallthru
      _
    // Predicated region
    $region34: #{tpu_custom_call.1} parent=1 // pred_check
      _
    $region35: #{tpu_custom_call.1} parent=1 // pred_check_branch
      %729 = sbr.rel (0) target = $region37
    $region36: #{tpu_custom_call.1} parent=1 // pred_region
      %s731 = ssub.s32 1024, 1024
      %732 = vsyncadd [#allocation5], %s731
      %s733 = sshll.u32 [#allocation8], 4
      %s734 = int_to_ptr.vmem [resolvable:$true] %s733
      %739 = dma.vmem_to_hbm [thread:$0]  %s734, 1024, %s4, [#allocation5], 64, 64, 4
    $region37: #{tpu_custom_call.1} parent=1 // pred_fallthru
      _
    // Predicated region
    $region38: #{tpu_custom_call.1} parent=1 // pred_check
      _
    $region39: #{tpu_custom_call.1} parent=1 // pred_check_branch
      %741 = sbr.rel (0) target = $region41
    $region40: #{tpu_custom_call.1} parent=1 // pred_region
      %742 = dma.done [#allocation5], 1024
    $region41: #{tpu_custom_call.1} parent=1 // pred_fallthru
      _
    %743 = vsyncpa [#allocation4], 1
    %744 = vsyncpa [#allocation7], 1
    %745 = vsyncpa [#allocation5], 1

</llo_original>
